<compile_context>
chip_gen: v6e
topology: v6e:2x2x1
jax: 0.10.0
libtpu: 0.0.40
codegen_flags: <defaults>
</compile_context>

<pallas_src>
import functools

import jax
import jax.numpy as jnp
from jax.experimental import pallas as pl
from jax.experimental.pallas import tpu as pltpu

GAMMA = 1.5
ALPHA = 0.25

LANE = 128
BLOCK_ROWS = 2048   # rows per grid step (multiple of 8); 2048*128*4B = 1 MiB f32 tile
NUM_SPLITS = 2      # leading "parallel" axis -> 2 TensorCores on v7x


def _round_up(a, b):
    return -(-a // b) * b


def _focal_loss_kernel(pred_ref, true_ref, out_ref, acc_ref, *,
                       gamma, alpha, n_elems, block_rows, steps):
    step = pl.program_id(1)

    # Zero the per-core accumulator at the start of this core's chunk.
    @pl.when(step == 0)
    def _():
        acc_ref[...] = jnp.zeros_like(acc_ref)

    x = pred_ref[...].astype(jnp.float32)
    y = true_ref[...].astype(jnp.float32)

    # Shared transcendentals: one exp, one log1p, one reciprocal, one sqrt.
    e = jnp.exp(-jnp.abs(x))                      # exp(-|x|)
    log_term = jnp.log1p(e)
    # BCE with logits (numerically stable, matches torch.nn.BCEWithLogitsLoss):
    #   max(x, 0) - x*y + log(1 + exp(-|x|))
    bce = jnp.maximum(x, 0.0) - x * y + log_term

    inv = 1.0 / (1.0 + e)                         # = sigmoid(|x|)
    p = jnp.where(x >= 0.0, inv, e * inv)         # = sigmoid(x)

    p_t = y * p + (1.0 - y) * (1.0 - p)
    alpha_factor = y * alpha + (1.0 - y) * (1.0 - alpha)
    t = jnp.maximum(1.0 - p_t, 0.0)               # clamp: robust to soft labels
    if gamma == 1.5:
        modulating = t * jnp.sqrt(t)
    elif gamma == 2.0:
        modulating = t * t
    elif gamma == 1.0:
        modulating = t
    else:
        modulating = t ** gamma

    loss = bce * alpha_factor * modulating

    # Mask out padded elements (global flat index >= n_elems).
    base_row = (pl.program_id(0) * steps + step) * block_rows
    row_ids = jax.lax.broadcasted_iota(jnp.int32, (block_rows, LANE), 0) + base_row
    col_ids = jax.lax.broadcasted_iota(jnp.int32, (block_rows, LANE), 1)
    flat_ids = row_ids * LANE + col_ids
    loss = jnp.where(flat_ids < n_elems, loss, 0.0)

    # Lane/sublane-resident accumulation: pure VALU adds per grid step.
    acc_ref[...] += jnp.sum(loss.reshape(block_rows // 8, 8, LANE), axis=0)

    # Emit this core's (8, 128) partial-sum block on its last step.
    @pl.when(step == steps - 1)
    def _():
        out_ref[...] = acc_ref[...]


def focal_loss(pred, true, gamma=GAMMA, alpha=ALPHA,
               block_rows=BLOCK_ROWS, num_splits=NUM_SPLITS):
    """pred, true: float arrays (any shape/dtype, same shape). Returns scalar f32 mean."""
    assert pred.shape == true.shape
    n_elems = pred.size

    rows = -(-n_elems // LANE)
    # Clamp the tile for tiny inputs; keep a multiple of 8 sublanes.
    block_rows = max(8, min(block_rows, _round_up(rows, 8)))
    blocks = -(-rows // block_rows)
    total_blocks = _round_up(blocks, num_splits)
    steps = total_blocks // num_splits
    padded_rows = total_blocks * block_rows
    padded_elems = padded_rows * LANE

    def _prep(a):
        flat = a.reshape(-1)
        if flat.size < padded_elems:
            flat = jnp.pad(flat, (0, padded_elems - flat.size))
        return flat.reshape(padded_rows, LANE)

    pred2d = _prep(pred)   # dtype preserved; cast to f32 inside the kernel
    true2d = _prep(true)

    kernel = functools.partial(
        _focal_loss_kernel, gamma=gamma, alpha=alpha,
        n_elems=n_elems, block_rows=block_rows, steps=steps,
    )

    partials = pl.pallas_call(
        kernel,
        out_shape=jax.ShapeDtypeStruct((num_splits * 8, LANE), jnp.float32),
        grid_spec=pltpu.PrefetchScalarGridSpec(
            num_scalar_prefetch=0,
            grid=(num_splits, steps),
            in_specs=[
                pl.BlockSpec((block_rows, LANE), lambda c, i: (c * steps + i, 0)),
                pl.BlockSpec((block_rows, LANE), lambda c, i: (c * steps + i, 0)),
            ],
            out_specs=pl.BlockSpec((8, LANE), lambda c, i: (c, 0)),
            scratch_shapes=[pltpu.VMEM((8, LANE), jnp.float32)],
        ),
        compiler_params=pltpu.CompilerParams(
            dimension_semantics=("parallel", "arbitrary"),
            vmem_limit_bytes=32 * 1024 * 1024,
        ),
    )(pred2d, true2d)

    # Single cheap cross-lane reduce + mean in XLA.
    return jnp.sum(partials) / jnp.float32(n_elems)


def focal_loss_ref(pred, true, gamma=GAMMA, alpha=ALPHA):
    """Pure-JAX reference mirroring the PyTorch module."""
    x = pred.astype(jnp.float32)
    y = true.astype(jnp.float32)
    bce = jnp.maximum(x, 0.0) - x * y + jnp.log1p(jnp.exp(-jnp.abs(x)))
    p = jax.nn.sigmoid(x)
    p_t = y * p + (1.0 - y) * (1.0 - p)
    alpha_factor = y * alpha + (1.0 - y) * (1.0 - alpha)
    modulating_factor = (1.0 - p_t) ** gamma
    return jnp.mean(bce * alpha_factor * modulating_factor)


if __name__ == "__main__":
    key = jax.random.PRNGKey(0)
    k_pred, k_true = jax.random.split(key)

    # NCHW like PyTorch: batch=2, channels=4, H=W=16 -> 2048 elements.
    shape = (2, 4, 16, 16)
    pred = jax.random.normal(k_pred, shape, dtype=jnp.float32)
    true = jax.random.bernoulli(k_true, p=0.3, shape=shape).astype(jnp.float32)

    out = focal_loss(pred, true)
    out = jax.block_until_ready(out)

    ref = focal_loss_ref(pred, true)
    assert jnp.allclose(out, ref, rtol=1e-5, atol=1e-6), (out, ref)

    print("KERNEL_OK")
</pallas_src>

<mosaic_0001>
module attributes {stable_mosaic.version = 11 : i64} {
  func.func @_focal_loss_kernel(%arg0: i32, %arg1: i32, %arg2: memref<16x128xf32, #tpu.memory_space<vmem>>, %arg3: memref<16x128xf32, #tpu.memory_space<vmem>>, %arg4: memref<8x128xf32, #tpu.memory_space<vmem>>, %arg5: memref<8x128xf32, #tpu.memory_space<vmem>>) attributes {dimension_semantics = [#tpu.dimension_semantics<parallel>, #tpu.dimension_semantics<arbitrary>], iteration_bounds = array<i64: 2, 1>, scalar_prefetch = 0 : i64, scratch_operands = 1 : i64, tpu.core_type = #tpu.core_type<tc>, window_params = [{transform_indices = @transform_0, window_bounds = array<i64: 16, 128>}, {transform_indices = @transform_1, window_bounds = array<i64: 16, 128>}, {transform_indices = @transform_2, window_bounds = array<i64: 8, 128>}]} {
    %c0_i32 = arith.constant 0 : i32
    %0 = arith.cmpi eq, %arg1, %c0_i32 : i32
    %1 = arith.extui %0 : i1 to i32
    %c0_i32_0 = arith.constant 0 : i32
    %2 = arith.cmpi ne, %1, %c0_i32_0 : i32
    scf.if %2 {
      %cst_23 = arith.constant 0.000000e+00 : f32
      %67 = vector.broadcast %cst_23 : f32 to vector<8x128xf32>
      %c0_24 = arith.constant 0 : index
      %c0_25 = arith.constant 0 : index
      %68 = vector.load %arg5[%c0_24, %c0_25] : memref<8x128xf32, #tpu.memory_space<vmem>>, vector<8x128xf32>
      tpu.vector_store %arg5[%c0_24, %c0_25], %67 {strides = array<i32>} : memref<8x128xf32, #tpu.memory_space<vmem>>, vector<8x128xf32>,
    } else {
    }
    %c0 = arith.constant 0 : index
    %c0_1 = arith.constant 0 : index
    %3 = vector.load %arg2[%c0, %c0_1] : memref<16x128xf32, #tpu.memory_space<vmem>>, vector<16x128xf32>
    %c0_2 = arith.constant 0 : index
    %c0_3 = arith.constant 0 : index
    %4 = vector.load %arg3[%c0_2, %c0_3] : memref<16x128xf32, #tpu.memory_space<vmem>>, vector<16x128xf32>
    %5 = math.absf %3 : vector<16x128xf32>
    %cst = arith.constant 0.000000e+00 : f32
    %6 = vector.broadcast %cst : f32 to vector<16x128xf32>
    %7 = arith.subf %6, %5 : vector<16x128xf32>
    %8 = math.exp %7 : vector<16x128xf32>
    %9 = math.log1p %8 : vector<16x128xf32>
    %cst_4 = arith.constant 0.000000e+00 : f32
    %10 = vector.broadcast %cst_4 : f32 to vector<16x128xf32>
    %11 = arith.maximumf %3, %10 : vector<16x128xf32>
    %12 = arith.mulf %3, %4 : vector<16x128xf32>
    %13 = arith.subf %11, %12 : vector<16x128xf32>
    %14 = arith.addf %13, %9 : vector<16x128xf32>
    %cst_5 = arith.constant 1.000000e+00 : f32
    %15 = vector.broadcast %cst_5 : f32 to vector<16x128xf32>
    %16 = arith.addf %15, %8 : vector<16x128xf32>
    %cst_6 = arith.constant 1.000000e+00 : f32
    %17 = vector.broadcast %cst_6 : f32 to vector<16x128xf32>
    %18 = arith.divf %17, %16 : vector<16x128xf32>
    %cst_7 = arith.constant 0.000000e+00 : f32
    %19 = vector.broadcast %cst_7 : f32 to vector<16x128xf32>
    %20 = arith.cmpf oge, %3, %19 : vector<16x128xf32>
    %21 = arith.mulf %8, %18 : vector<16x128xf32>
    %22 = arith.select %20, %18, %21 : vector<16x128xi1>, vector<16x128xf32>
    %23 = arith.mulf %4, %22 : vector<16x128xf32>
    %cst_8 = arith.constant 1.000000e+00 : f32
    %24 = vector.broadcast %cst_8 : f32 to vector<16x128xf32>
    %25 = arith.subf %24, %4 : vector<16x128xf32>
    %cst_9 = arith.constant 1.000000e+00 : f32
    %26 = vector.broadcast %cst_9 : f32 to vector<16x128xf32>
    %27 = arith.subf %26, %22 : vector<16x128xf32>
    %28 = arith.mulf %25, %27 : vector<16x128xf32>
    %29 = arith.addf %23, %28 : vector<16x128xf32>
    %cst_10 = arith.constant 2.500000e-01 : f32
    %30 = vector.broadcast %cst_10 : f32 to vector<16x128xf32>
    %31 = arith.mulf %4, %30 : vector<16x128xf32>
    %cst_11 = arith.constant 1.000000e+00 : f32
    %32 = vector.broadcast %cst_11 : f32 to vector<16x128xf32>
    %33 = arith.subf %32, %4 : vector<16x128xf32>
    %cst_12 = arith.constant 7.500000e-01 : f32
    %34 = vector.broadcast %cst_12 : f32 to vector<16x128xf32>
    %35 = arith.mulf %33, %34 : vector<16x128xf32>
    %36 = arith.addf %31, %35 : vector<16x128xf32>
    %cst_13 = arith.constant 1.000000e+00 : f32
    %37 = vector.broadcast %cst_13 : f32 to vector<16x128xf32>
    %38 = arith.subf %37, %29 : vector<16x128xf32>
    %cst_14 = arith.constant 0.000000e+00 : f32
    %39 = vector.broadcast %cst_14 : f32 to vector<16x128xf32>
    %40 = arith.maximumf %38, %39 : vector<16x128xf32>
    %41 = math.sqrt %40 : vector<16x128xf32>
    %42 = arith.mulf %40, %41 : vector<16x128xf32>
    %43 = arith.mulf %14, %36 : vector<16x128xf32>
    %44 = arith.mulf %43, %42 : vector<16x128xf32>
    %c1_i32 = arith.constant 1 : i32
    %45 = arith.muli %arg0, %c1_i32 : i32
    %46 = arith.addi %45, %arg1 : i32
    %c16_i32 = arith.constant 16 : i32
    %47 = arith.muli %46, %c16_i32 : i32
    %48 = tpu.iota {dimensions = array<i32: 0>} : vector<16x128xi32>
    %49 = vector.broadcast %47 : i32 to vector<16x128xi32>
    %50 = arith.addi %48, %49 : vector<16x128xi32>
    %51 = tpu.iota {dimensions = array<i32: 1>} : vector<16x128xi32>
    %c128_i32 = arith.constant 128 : i32
    %52 = vector.broadcast %c128_i32 : i32 to vector<16x128xi32>
    %53 = arith.muli %50, %52 : vector<16x128xi32>
    %54 = arith.addi %53, %51 : vector<16x128xi32>
    %c2048_i32 = arith.constant 2048 : i32
    %55 = vector.broadcast %c2048_i32 : i32 to vector<16x128xi32>
    %56 = arith.cmpi slt, %54, %55 : vector<16x128xi32>
    %cst_15 = arith.constant 0.000000e+00 : f32
    %57 = vector.broadcast %cst_15 : f32 to vector<16x128xf32>
    %58 = arith.select %56, %44, %57 : vector<16x128xi1>, vector<16x128xf32>
    %c0_16 = arith.constant 0 : index
    %c0_17 = arith.constant 0 : index
    %59 = vector.load %arg5[%c0_16, %c0_17] : memref<8x128xf32, #tpu.memory_space<vmem>>, vector<8x128xf32>
    %60 = vector.shape_cast %58 : vector<16x128xf32> to vector<2x8x128xf32>
    %cst_18 = arith.constant dense<0.000000e+00> : vector<8x128xf32>
    %61 = vector.multi_reduction <add>, %60, %cst_18 [0] : vector<2x8x128xf32> to vector<8x128xf32>
    %62 = arith.addf %59, %61 : vector<8x128xf32>
    %c0_19 = arith.constant 0 : index
    %c0_20 = arith.constant 0 : index
    %63 = vector.load %arg5[%c0_19, %c0_20] : memref<8x128xf32, #tpu.memory_space<vmem>>, vector<8x128xf32>
    tpu.vector_store %arg5[%c0_19, %c0_20], %62 {strides = array<i32>} : memref<8x128xf32, #tpu.memory_space<vmem>>, vector<8x128xf32>,
    %c0_i32_21 = arith.constant 0 : i32
    %64 = arith.cmpi eq, %arg1, %c0_i32_21 : i32
    %65 = arith.extui %64 : i1 to i32
    %c0_i32_22 = arith.constant 0 : i32
    %66 = arith.cmpi ne, %65, %c0_i32_22 : i32
    scf.if %66 {
      %c0_23 = arith.constant 0 : index
      %c0_24 = arith.constant 0 : index
      %67 = vector.load %arg5[%c0_23, %c0_24] : memref<8x128xf32, #tpu.memory_space<vmem>>, vector<8x128xf32>
      %c0_25 = arith.constant 0 : index
      %c0_26 = arith.constant 0 : index
      %68 = vector.load %arg4[%c0_25, %c0_26] : memref<8x128xf32, #tpu.memory_space<vmem>>, vector<8x128xf32>
      tpu.vector_store %arg4[%c0_25, %c0_26], %67 {strides = array<i32>} : memref<8x128xf32, #tpu.memory_space<vmem>>, vector<8x128xf32>,
    } else {
    }
    return
  }
  func.func @transform_0(%arg0: i32, %arg1: i32) -> (i32, i32) {
    %c1_i32 = arith.constant 1 : i32
    %0 = arith.muli %arg0, %c1_i32 : i32
    %1 = arith.addi %0, %arg1 : i32
    %c0_i32 = arith.constant 0 : i32
    %c0_i32_0 = arith.constant 0 : i32
    return %1, %c0_i32 : i32, i32
  }
  func.func @transform_1(%arg0: i32, %arg1: i32) -> (i32, i32) {
    %c1_i32 = arith.constant 1 : i32
    %0 = arith.muli %arg0, %c1_i32 : i32
    %1 = arith.addi %0, %arg1 : i32
    %c0_i32 = arith.constant 0 : i32
    %c0_i32_0 = arith.constant 0 : i32
    return %1, %c0_i32 : i32, i32
  }
  func.func @transform_2(%arg0: i32, %arg1: i32) -> (i32, i32) {
    %c0_i32 = arith.constant 0 : i32
    %c0_i32_0 = arith.constant 0 : i32
    return %arg0, %c0_i32 : i32, i32
  }
}

</mosaic_0001>

<llo_original>
// kernel: tpu_custom_call.1
$region0: #{tpu_custom_call.1}
  #allocation0 [shape = 'u32[]', space=smem, size = 0x4, offset = 0x4, fixed_abs, tag = 'smem constant byte address 0x4 - core index']
  #allocation1 [shape = 'u32[144,128]{1,0:T(1,128)}', space=vmem, size = 0x12000, scoped, tag = 'internal scratch']
  #allocation2 [shape = 'f32[8,128]{1,0:T(8,128)}', space=vmem, size = 0x1000, scoped, tag = 'scratch operand']
  %s0 = inlined_call_operand.hbm [shape: f32[32,128], index: 0, kind: input, shape index: {}]
  %s1 = inlined_call_operand.hbm [shape: f32[32,128], index: 1, kind: input, shape index: {}]
  %s2 = inlined_call_operand.hbm [shape: f32[16,128], index: 2, kind: output, shape index: {}]
  %s3 = sld [smem:[#allocation0]]
  $region57: #{tpu_custom_call.1} parent=0
    _
  %s5 = ssub.s32 1, %s3
  %s6 = scalar_select 0, %s5, %s3
  $region1: #{tpu_custom_call.1} parent=0
    #allocation3 [shape = 'u8[16384]{0}', space=vmem, size = 0x4000, scoped, tag = 'input window, operand 0']
    #allocation4 [shape = 's32[2]{0}', space=sflag, size = 0x8, scoped, tag = 'scoped memory for tpu_custom_call.1']
    #allocation5 [shape = 's32[2]{0}', space=sflag, size = 0x8, scoped, tag = 'scoped memory for tpu_custom_call.1']
    #allocation6 [shape = 'u8[16384]{0}', space=vmem, size = 0x4000, scoped, tag = 'input window, operand 1']
    #allocation7 [shape = 's32[2]{0}', space=sflag, size = 0x8, scoped, tag = 'scoped memory for tpu_custom_call.1']
    #allocation8 [shape = 'u8[8192]{0}', space=vmem, size = 0x2000, scoped, tag = 'output window, operand 0']
    %7 = vsyncpa [#allocation4], 0
    %s8 = scalar_lea.sflag [#allocation4], 1
    %9 = vsyncpa %s8, 0
    %10 = vsyncpa [#allocation7], 0
    %s11 = scalar_lea.sflag [#allocation7], 1
    %12 = vsyncpa %s11, 0
    %13 = vsyncpa [#allocation5], 0
    %s14 = scalar_lea.sflag [#allocation5], 1
    %15 = vsyncpa %s14, 0
    loop: start=0, step=1, limit=4
    $region2: #{tpu_custom_call.1} parent=1 // loop_pre_header
      _
    $region3: #{tpu_custom_call.1} parent=1 // loop_header
      %s17 = sphi 0, %s21
      %p18 = scmp.ge.s32.totalorder %s17, 4
      %s24 = sphi 0, %s36
      %s25 = sphi 0, %s32
      %s26 = sphi 0, %s24
      %s27 = sphi 0, %s25
      %s28 = sphi 0, %s26
      %s29 = sphi 0, %s27
      %s41 = sphi 0, %s43
      %s44 = sphi 0, %s41
      %s45 = sphi 0, %s44
      %s61 = sphi 0, %s45
      %s69 = sphi 0, %s71
      %s72 = sphi 0, %s69
      %s73 = sphi 0, %s72
      %s89 = sphi 0, %s73
      %s95 = sphi 0, %s97
      %s98 = sphi 0, %s95
      %s99 = sphi 0, %s98
      %s115 = sphi 0, %s99
    $region4: #{tpu_custom_call.1} parent=1 // loop_header_branch
      %20 = sbr.rel (%p18) target = $region8
    $region5: #{tpu_custom_call.1} parent=1 // loop_body
      %s22 = ssub.s32 %s17, 1
      %s23 = ssub.s32 %s17, 2
      %s30 = sadd.s32 1, %s25
      %p31 = scmp.ge.s32.totalorder %s30, 1
      %s32 = scalar_select %p31, 0, %s30
      %s33 = sadd.s32 1, %s24
      %s34 = scalar_select %p31, %s33, %s24
      %p35 = scmp.ge.s32.totalorder %s34, 2
      %s36 = scalar_select %p35, 0, %s34
      %s37 = sadd.s32 %s24, %s25
      %s38 = sadd.s32 %s36, %s32
      %s39 = ssub.s32 %s37, %s38
      %p40 = scmp.eq.s32.totalorder %s39, 0
      %s42 = sadd.s32 %s41, 1
      %s43 = scalar_select %p40, %s41, %s42
      %p46 = pneg %p40
      %p47 = scmp.eq.s32.totalorder %s17, 1
      %p48 = por %p46, %p47
      %p49 = scmp.ne.s32.totalorder %s41, %s44
      %p50 = scmp.eq.s32.totalorder %s17, 0
      %p51 = por %p49, %p50
      %p52 = scmp.ne.s32.totalorder %s41, %s44
      %p53 = scmp.eq.s32.totalorder %s22, 1
      %p54 = por %p52, %p53
      %p55 = scmp.ne.s32.totalorder %s44, %s45
      %p56 = scmp.eq.s32.totalorder %s22, 0
      %p57 = por %p55, %p56
      %p58 = scmp.ne.s32.totalorder %s44, %s45
      %p59 = scmp.eq.s32.totalorder %s23, 1
      %p60 = por %p58, %p59
      %p62 = scmp.ne.s32.totalorder %s45, %s61
      %p63 = scmp.eq.s32.totalorder %s23, 0
      %p64 = por %p62, %p63
      %s65 = sadd.s32 %s24, %s25
      %s66 = sadd.s32 %s36, %s32
      %s67 = ssub.s32 %s65, %s66
      %p68 = scmp.eq.s32.totalorder %s67, 0
      %s70 = sadd.s32 %s69, 1
      %s71 = scalar_select %p68, %s69, %s70
      %p74 = pneg %p68
      %p75 = scmp.eq.s32.totalorder %s17, 1
      %p76 = por %p74, %p75
      %p77 = scmp.ne.s32.totalorder %s69, %s72
      %p78 = scmp.eq.s32.totalorder %s17, 0
      %p79 = por %p77, %p78
      %p80 = scmp.ne.s32.totalorder %s69, %s72
      %p81 = scmp.eq.s32.totalorder %s22, 1
      %p82 = por %p80, %p81
      %p83 = scmp.ne.s32.totalorder %s72, %s73
      %p84 = scmp.eq.s32.totalorder %s22, 0
      %p85 = por %p83, %p84
      %p86 = scmp.ne.s32.totalorder %s72, %s73
      %p87 = scmp.eq.s32.totalorder %s23, 1
      %p88 = por %p86, %p87
      %p90 = scmp.ne.s32.totalorder %s73, %s89
      %p91 = scmp.eq.s32.totalorder %s23, 0
      %p92 = por %p90, %p91
      %s93 = ssub.s32 %s24, %s36
      %p94 = scmp.eq.s32.totalorder %s93, 0
      %s96 = sadd.s32 %s95, 1
      %s97 = scalar_select %p94, %s95, %s96
      %p100 = pneg %p94
      %p101 = scmp.eq.s32.totalorder %s17, 1
      %p102 = por %p100, %p101
      %p103 = scmp.ne.s32.totalorder %s95, %s98
      %p104 = scmp.eq.s32.totalorder %s17, 0
      %p105 = por %p103, %p104
      %p106 = scmp.ne.s32.totalorder %s95, %s98
      %p107 = scmp.eq.s32.totalorder %s22, 1
      %p108 = por %p106, %p107
      %p109 = scmp.ne.s32.totalorder %s98, %s99
      %p110 = scmp.eq.s32.totalorder %s22, 0
      %p111 = por %p109, %p110
      %p112 = scmp.ne.s32.totalorder %s98, %s99
      %p113 = scmp.eq.s32.totalorder %s23, 1
      %p114 = por %p112, %p113
      %p116 = scmp.ne.s32.totalorder %s99, %s115
      %p117 = scmp.eq.s32.totalorder %s23, 0
      %p118 = por %p116, %p117
      %p119 = scmp.le.s32.totalorder 1, %s17
      %p120 = scmp.lt.s32.totalorder %s17, 3
      %p121 = pnand %p119, %p120
      %p122 = pneg %p121
      // Predicated region
      $region9: #{tpu_custom_call.1} parent=5 // pred_check
        _
      $region10: #{tpu_custom_call.1} parent=5 // pred_check_branch
        %124 = sbr.rel (%p121) target = $region12
      $region11: #{tpu_custom_call.1} parent=5 // pred_region
        %s125 = ssub.s32 %s17, 1
      $region12: #{tpu_custom_call.1} parent=5 // pred_fallthru
        _
      %p126 = scmp.lt.s32.totalorder %s17, 2
      // Predicated region
      $region13: #{tpu_custom_call.1} parent=5 // pred_check
        %p127 = pneg %p126
      $region14: #{tpu_custom_call.1} parent=5 // pred_check_branch
        %129 = sbr.rel (%p127) target = $region16
      $region15: #{tpu_custom_call.1} parent=5 // pred_region
        // Predicated region
        $region17: #{tpu_custom_call.1} parent=15 // pred_check
          %p130 = pneg %p51
        $region18: #{tpu_custom_call.1} parent=15 // pred_check_branch
          %132 = sbr.rel (%p130) target = $region20
        $region19: #{tpu_custom_call.1} parent=15 // pred_region
          %s133 = sand.u32 %s41, 1
          %s134 = scalar_lea.sflag [#allocation4], %s133
          %s135 = sand.u32 %s41, 1
          %s136 = smul.addr %s135, 16
          %s137 = scalar_lea.vmem [#allocation3], %s136
          %s138 = sadd.s32 %s24, %s25
          %s139 = smul.u32 2, %s138
          %s141 = ssub.s32 256, 256
          %142 = vsyncadd %s134, %s141
          %s143 = smul.addr %s139, 128
          %s144 = scalar_lea.hbm %s0, %s143
          %s145 = sshll.u32 %s137, 4
          %s146 = int_to_ptr.vmem [resolvable:$true] %s145
          %151 = dma.hbm_to_vmem [thread:$0]  %s144, 256, %s146, %s134, 128, 128, 8
        $region20: #{tpu_custom_call.1} parent=15 // pred_fallthru
          _
        // Predicated region
        $region21: #{tpu_custom_call.1} parent=15 // pred_check
          %p152 = pneg %p79
        $region22: #{tpu_custom_call.1} parent=15 // pred_check_branch
          %154 = sbr.rel (%p152) target = $region24
        $region23: #{tpu_custom_call.1} parent=15 // pred_region
          %s155 = sand.u32 %s69, 1
          %s156 = scalar_lea.sflag [#allocation7], %s155
          %s157 = sand.u32 %s69, 1
          %s158 = smul.addr %s157, 16
          %s159 = scalar_lea.vmem [#allocation6], %s158
          %s160 = sadd.s32 %s24, %s25
          %s161 = smul.u32 2, %s160
          %s163 = ssub.s32 256, 256
          %164 = vsyncadd %s156, %s163
          %s165 = smul.addr %s161, 128
          %s166 = scalar_lea.hbm %s1, %s165
          %s167 = sshll.u32 %s159, 4
          %s168 = int_to_ptr.vmem [resolvable:$true] %s167
          %173 = dma.hbm_to_vmem [thread:$0]  %s166, 256, %s168, %s156, 128, 128, 8
        $region24: #{tpu_custom_call.1} parent=15 // pred_fallthru
          _
      $region16: #{tpu_custom_call.1} parent=5 // pred_fallthru
        _
      %p174 = scmp.le.s32.totalorder 1, %s17
      %p175 = scmp.lt.s32.totalorder %s17, 3
      %p176 = pnand %p174, %p175
      %p177 = pneg %p176
      // Predicated region
      $region25: #{tpu_custom_call.1} parent=5 // pred_check
        _
      $region26: #{tpu_custom_call.1} parent=5 // pred_check_branch
        %179 = sbr.rel (%p176) target = $region28
      $region27: #{tpu_custom_call.1} parent=5 // pred_region
        %s180 = ssub.s32 %s17, 1
        %s181 = sand.u32 %s44, 1
        %s182 = scalar_lea.sflag [#allocation4], %s181
        %s183 = sand.u32 %s44, 1
        %s184 = smul.addr %s183, 16
        %s185 = scalar_lea.vmem [#allocation3], %s184
        // Predicated region
        $region29: #{tpu_custom_call.1} parent=27 // pred_check
          %p186 = pneg %p57
        $region30: #{tpu_custom_call.1} parent=27 // pred_check_branch
          %188 = sbr.rel (%p186) target = $region32
        $region31: #{tpu_custom_call.1} parent=27 // pred_region
          %189 = dma.done %s182, 256
        $region32: #{tpu_custom_call.1} parent=27 // pred_fallthru
          _
        %s190 = sand.u32 %s72, 1
        %s191 = scalar_lea.sflag [#allocation7], %s190
        %s192 = sand.u32 %s72, 1
        %s193 = smul.addr %s192, 16
        %s194 = scalar_lea.vmem [#allocation6], %s193
        // Predicated region
        $region33: #{tpu_custom_call.1} parent=27 // pred_check
          %p195 = pneg %p85
        $region34: #{tpu_custom_call.1} parent=27 // pred_check_branch
          %197 = sbr.rel (%p195) target = $region36
        $region35: #{tpu_custom_call.1} parent=27 // pred_region
          %198 = dma.done %s191, 256
        $region36: #{tpu_custom_call.1} parent=27 // pred_fallthru
          _
        %s199 = sand.u32 %s44, 1
        %s200 = scalar_lea.sflag [#allocation4], %s199
        %s201 = sand.u32 %s44, 1
        %s202 = smul.addr %s201, 16
        %s203 = scalar_lea.vmem [#allocation3], %s202
        %p204 = pneg %p57
        %p205 = pneg %p54
        %s206 = sand.u32 %s72, 1
        %s207 = scalar_lea.sflag [#allocation7], %s206
        %s208 = sand.u32 %s72, 1
        %s209 = smul.addr %s208, 16
        %s210 = scalar_lea.vmem [#allocation6], %s209
        %p211 = pneg %p85
        %p212 = pneg %p82
        %p213 = pneg %p111
        %p214 = pneg %p108
        %s215 = sand.u32 %s98, 1
        %s216 = scalar_lea.sflag [#allocation5], %s215
        %s217 = sand.u32 %s98, 1
        %s218 = smul.addr %s217, 8
        %s219 = scalar_lea.vmem [#allocation8], %s218
        %s220 = sadd.s32 %s26, %s27
        %s221 = smul.u32 2, %s220
        %s222 = sadd.s32 %s26, %s27
        %s223 = smul.u32 2, %s222
        %p224 = scmp.eq.s32.totalorder %s27, 0
        // Predicated region
        $region37: #{tpu_custom_call.1} parent=27 // pred_check
          %p225 = pneg %p224
        $region38: #{tpu_custom_call.1} parent=27 // pred_check_branch
          %227 = sbr.rel (%p225) target = $region40
        $region39: #{tpu_custom_call.1} parent=27 // pred_region
          %228 = vst [vmem:[#allocation2] sm:$0xff] 0.0
        $region40: #{tpu_custom_call.1} parent=27 // pred_fallthru
          _
        %v229 = vld [vmem:[%s185] sm:$0xff]
        %v230 = vld [vmem:[%s185 + $0x8] sm:$0xff]
        %v231 = vld [vmem:[%s194] sm:$0xff]
        %v232 = vld [vmem:[%s194 + $0x8] sm:$0xff]
        %v233 = vand.u32 2147483647, %v229
        %v234 = vand.u32 2147483647, %v230
        %v235 = vsub.f32 0.0, %v233
        %v236 = vsub.f32 0.0, %v234
        %v237 = vmul.f32 %v235, 1.442695
        %v238 = vpow.pop %v237
        %v239 = vmul.f32 %v236, 1.442695
        %v240 = vpow.pop %v239
        %v241 = vadd.f32 %v238, 1.0
        %v242 = vlog2.pop %v241
        %v243 = vmul.f32 %v242, 0.6931472
        %v244 = vmul.f32 -0.5, %v238
        %v245 = vadd.f32 %v244, 1.0
        %v246 = vmul.f32 %v245, %v238
        %v247 = vand.u32 2147483647, %v238
        %vm248 = vcmp.lt.f32.partialorder %v247, 0.0004427343
        %v249 = vsel %vm248, %v246, %v243
        %v250 = vadd.f32 %v240, 1.0
        %v251 = vlog2.pop %v250
        %v252 = vmul.f32 %v251, 0.6931472
        %v253 = vmul.f32 -0.5, %v240
        %v254 = vadd.f32 %v253, 1.0
        %v255 = vmul.f32 %v254, %v240
        %v256 = vand.u32 2147483647, %v240
        %vm257 = vcmp.lt.f32.partialorder %v256, 0.0004427343
        %v258 = vsel %vm257, %v255, %v252
        %v259 = vmax.f32 %v229, 0.0
        %v260 = vmax.f32 %v230, 0.0
        %v261 = vmul.f32 %v229, %v231
        %v262 = vmul.f32 %v230, %v232
        %v263 = vsub.f32 %v259, %v261
        %v264 = vsub.f32 %v260, %v262
        %v265 = vadd.f32 %v263, %v249
        %v266 = vadd.f32 %v264, %v258
        %v267 = vadd.f32 %v238, 1.0
        %v268 = vadd.f32 %v240, 1.0
        %v269 = vrcp.pop %v267
        %v270 = vmul.f32 1.0, %v269
        %v271 = vrcp.pop %v268
        %v272 = vmul.f32 1.0, %v271
        %vm273 = vcmp.ge.f32.partialorder %v229, 0.0
        %vm274 = vcmp.ge.f32.partialorder %v230, 0.0
        %v275 = vmul.f32 %v238, %v270
        %v276 = vmul.f32 %v240, %v272
        %v277 = vsel %vm273, %v270, %v275
        %v278 = vsel %vm274, %v272, %v276
        %v279 = vmul.f32 %v231, %v277
        %v280 = vmul.f32 %v232, %v278
        %v281 = vsub.f32 1.0, %v231
        %v282 = vsub.f32 1.0, %v232
        %v283 = vsub.f32 1.0, %v277
        %v284 = vsub.f32 1.0, %v278
        %v285 = vmul.f32 %v281, %v283
        %v286 = vmul.f32 %v282, %v284
        %v287 = vadd.f32 %v279, %v285
        %v288 = vadd.f32 %v280, %v286
        %v289 = vmul.f32 %v231, 0.25
        %v290 = vmul.f32 %v232, 0.25
        %v291 = vmul.f32 %v281, 0.75
        %v292 = vmul.f32 %v282, 0.75
        %v293 = vadd.f32 %v289, %v291
        %v294 = vadd.f32 %v290, %v292
        %v295 = vsub.f32 1.0, %v287
        %v296 = vsub.f32 1.0, %v288
        %v297 = vmax.f32 %v295, 0.0
        %v298 = vmax.f32 %v296, 0.0
        %v299 = vrsqrt.pop %v297
        %v300 = vmul.f32 %v297, %v299
        %vm301 = vcmp.eq.f32.partialorder %v297, inf
        %v302 = vsel %vm301, %v297, %v300
        %vm303 = vcmp.eq.f32.partialorder %v297, 0.0
        %v304 = vand.u32 %v297, 2147483648
        %v305 = vsel %vm303, %v304, %v302
        %v306 = vrsqrt.pop %v298
        %v307 = vmul.f32 %v298, %v306
        %vm308 = vcmp.eq.f32.partialorder %v298, inf
        %v309 = vsel %vm308, %v298, %v307
        %vm310 = vcmp.eq.f32.partialorder %v298, 0.0
        %v311 = vand.u32 %v298, 2147483648
        %v312 = vsel %vm310, %v311, %v309
        %v313 = vmul.f32 %v297, %v305
        %v314 = vmul.f32 %v298, %v312
        %v315 = vmul.f32 %v265, %v293
        %v316 = vmul.f32 %v266, %v294
        %v317 = vmul.f32 %v315, %v313
        %v318 = vmul.f32 %v316, %v314
        %s319 = sadd.s32 %s26, %s27
        %s320 = smul.u32 %s319, 16
        %v321 = vlaneseq
        %v322 = vshrl.u32 %v321, 7
        %v323 = vadd.s32 %v322, 8
        %v324 = vstv %s320
        %v325 = vadd.s32 %v322, %v324
        %v326 = vadd.s32 %v323, %v324
        %v327 = vlaneseq
        %v328 = vand.u32 %v327, 127
        %v329 = vmul.u32 %v325, 128
        %v330 = vmul.u32 %v326, 128
        %v331 = vadd.s32 %v329, %v328
        %v332 = vadd.s32 %v330, %v328
        %vm333 = vcmp.lt.s32.totalorder %v331, 2048
        %vm334 = vcmp.lt.s32.totalorder %v332, 2048
        %v335 = vsel %vm333, %v317, 0.0
        %v336 = vsel %vm334, %v318, 0.0
        %v337 = vld [vmem:[#allocation2] sm:$0xff]
        %v338 = vadd.f32 %v335, %v336
        %v339 = vadd.f32 %v337, %v338
        %340 = vst [vmem:[#allocation2] sm:$0xff] %v339
        // Predicated region
        $region41: #{tpu_custom_call.1} parent=27 // pred_check
          %p341 = pneg %p224
        $region42: #{tpu_custom_call.1} parent=27 // pred_check_branch
          %343 = sbr.rel (%p341) target = $region44
        $region43: #{tpu_custom_call.1} parent=27 // pred_region
          %v344 = vld [vmem:[#allocation2] sm:$0xff]
          %345 = vst [vmem:[%s219] sm:$0xff] %v344
        $region44: #{tpu_custom_call.1} parent=27 // pred_fallthru
          _
        %s346 = sand.u32 %s98, 1
        %s347 = scalar_lea.sflag [#allocation5], %s346
        %s348 = sand.u32 %s98, 1
        %s349 = smul.addr %s348, 8
        %s350 = scalar_lea.vmem [#allocation8], %s349
        // Predicated region
        $region45: #{tpu_custom_call.1} parent=27 // pred_check
          %p351 = pneg %p108
        $region46: #{tpu_custom_call.1} parent=27 // pred_check_branch
          %353 = sbr.rel (%p351) target = $region48
        $region47: #{tpu_custom_call.1} parent=27 // pred_region
          %s355 = ssub.s32 128, 128
          %356 = vsyncadd %s347, %s355
          %s357 = smul.addr %s26, 128
          %s358 = scalar_lea.hbm %s2, %s357
          %s360 = sshll.u32 %s350, 4
          %s361 = int_to_ptr.vmem [resolvable:$true] %s360
          %363 = dma.vmem_to_hbm [thread:$0]  %s361, 128, %s358, %s347
        $region48: #{tpu_custom_call.1} parent=27 // pred_fallthru
          _
      $region28: #{tpu_custom_call.1} parent=5 // pred_fallthru
        _
      %p364 = scmp.le.s32.totalorder 2, %s17
      // Predicated region
      $region49: #{tpu_custom_call.1} parent=5 // pred_check
        %p365 = pneg %p364
      $region50: #{tpu_custom_call.1} parent=5 // pred_check_branch
        %367 = sbr.rel (%p365) target = $region52
      $region51: #{tpu_custom_call.1} parent=5 // pred_region
        %s368 = ssub.s32 %s17, 2
        // Predicated region
        $region53: #{tpu_custom_call.1} parent=51 // pred_check
          %p369 = pneg %p114
        $region54: #{tpu_custom_call.1} parent=51 // pred_check_branch
          %371 = sbr.rel (%p369) target = $region56
        $region55: #{tpu_custom_call.1} parent=51 // pred_region
          %s372 = sand.u32 %s99, 1
          %s373 = scalar_lea.sflag [#allocation5], %s372
          %s374 = sand.u32 %s99, 1
          %s375 = smul.addr %s374, 8
          %s376 = scalar_lea.vmem [#allocation8], %s375
          %377 = dma.done %s373, 128
        $region56: #{tpu_custom_call.1} parent=51 // pred_fallthru
          _
      $region52: #{tpu_custom_call.1} parent=5 // pred_fallthru
        _
    $region6: #{tpu_custom_call.1} parent=1 // loop_footer
      %s21 = sadd.s32 1, %s17
    $region7: #{tpu_custom_call.1} parent=1 // loop_footer_branch
      %16 = sbr.rel target = $region3
    $region8: #{tpu_custom_call.1} parent=1 // loop_exit
      _
    %378 = vsyncpa [#allocation4], 1
    %s379 = scalar_lea.sflag [#allocation4], 1
    %380 = vsyncpa %s379, 1
    %381 = vsyncpa [#allocation7], 1
    %s382 = scalar_lea.sflag [#allocation7], 1
    %383 = vsyncpa %s382, 1
    %384 = vsyncpa [#allocation5], 1
    %s385 = scalar_lea.sflag [#allocation5], 1
    %386 = vsyncpa %s385, 1

</llo_original>
